<compile_context>
chip_gen: v5e
topology: v5e:2x2
jax: 0.10.0
libtpu: 0.0.40
codegen_flags: <defaults>
</compile_context>

<pallas_src>
from functools import partial

import jax
import jax.numpy as jnp
from jax.experimental import pallas as pl
from jax.experimental.pallas import tpu as pltpu

_LANE = 128
_SUB = 8
_CHUNK = _SUB * _LANE          # 1024 samples = one dense (8,128) f32 vreg per row
_M = 4                         # number of inequality rows
_K = 2                         # input features


def _make_kernel(C1: float, C2: float):
    inv_c1_sq = 1.0 / (C1 * C1)
    inv_c2_sq = 1.0 / (C2 * C2)

    def kernel(w_ref, b_ref, x_ref, o_ref):
        # w_ref: SMEM (8,)  row-major flattened (4,2) weights
        # b_ref: SMEM (4,)
        # x_ref: VMEM (K, 8, L)  — samples on (sublane, lane), fully dense slabs
        # o_ref: VMEM (M, 8, L)
        x0 = x_ref[0]            # (8, L) dense slab, feature 0
        x1 = x_ref[1]            # (8, L) dense slab, feature 1

        for m in range(_M):
            # Affine row: broadcast FMAs with scalar weights/bias from SMEM.
            z = x0 * w_ref[2 * m] + x1 * w_ref[2 * m + 1] + b_ref[m]
            # Fused greater_or_equal: one select, one EUP reciprocal + Newton step.
            inv_c = jnp.where(z >= 0.0, inv_c2_sq, inv_c1_sq)
            d = 1.0 + z * z * inv_c                 # d >= 1, well conditioned
            r = pl.reciprocal(d, approx=True)       # EUP slot (free vs VALU)
            r = r * (2.0 - d * r)                   # one Newton step: ~1e-7 rel err
            o_ref[m] = r                            # unmasked full-slab store

    return kernel


def _forward_channels_first(x_t, w_flat, b_flat, *, C1, C2, tile_n):
    """Core: x_t (K, N) f32 -> (M, N) f32, no host transposes."""
    K, N = x_t.shape
    assert K == _K

    # Tile: multiple of 1024 samples (8 sublanes x 128 lanes per feature row).
    n_pad_min = -(-N // _CHUNK) * _CHUNK
    tile = min(int(tile_n), n_pad_min)
    tile = max(_CHUNK, (tile // _CHUNK) * _CHUNK)
    n_padded = -(-N // tile) * tile
    grid_n = n_padded // tile
    L = tile // _SUB                      # lanes per (8, L) slab (multiple of 128)
    n_rows = n_padded // L                # = grid_n * 8

    if n_padded != N:
        # Zero padding is harmless: padded columns are sliced away below.
        x_t = jnp.pad(x_t, ((0, 0), (0, n_padded - N)))

    # Free row-major reshape: (K, n_padded) -> (K, n_rows, L); block = (K, 8, L).
    x3 = x_t.reshape(_K, n_rows, L)

    kernel = _make_kernel(float(C1), float(C2))

    out3 = pl.pallas_call(
        kernel,
        out_shape=jax.ShapeDtypeStruct((_M, n_rows, L), jnp.float32),
        grid_spec=pltpu.PrefetchScalarGridSpec(
            num_scalar_prefetch=0,
            grid=(grid_n,),
            in_specs=[
                # Small scalar tables -> SMEM, resident for the whole kernel.
                pl.BlockSpec(memory_space=pltpu.MemorySpace.SMEM),
                pl.BlockSpec(memory_space=pltpu.MemorySpace.SMEM),
                # Dense (8, L) slab per feature row.
                pl.BlockSpec((_K, _SUB, L), lambda i: (0, i, 0)),
            ],
            out_specs=pl.BlockSpec((_M, _SUB, L), lambda i: (0, i, 0)),
        ),
        # Single streaming axis; "parallel" lets the runtime shard it across the
        # two TensorCores on v7x (no-op on single-TC v5e/v6e).
        compiler_params=pltpu.CompilerParams(
            dimension_semantics=("parallel",)),
    )(w_flat, b_flat, x3)

    # Slice padded columns away *before* any transpose happens downstream.
    return out3.reshape(_M, n_padded)[:, :N]


def _reg_and_flatten(W, b, weight_reg):
    W = W.astype(jnp.float32)
    b = b.astype(jnp.float32)
    if weight_reg:
        # Row-wise normalization by max-abs (torch does this under no_grad).
        W = W / jnp.max(jnp.abs(W), axis=1, keepdims=True)
    return W.reshape(_M * _K), b.reshape(_M)


@partial(jax.jit, static_argnames=("C1", "C2", "weight_reg", "tile_n"))
def gt_2d_diamond_forward(x, W, b, C1=1.0, C2=25.0, weight_reg=True,
                          tile_n=131072):
    """Module contract: x (N, 2) f32 -> (N, 4) f32.

    The transpose-in / transpose-out passes live inside this single jit (XLA fuses
    them with the pad/slice); callers that can produce channels-first data should
    use gt_2d_diamond_forward_channels_first to avoid them entirely.
    """
    x = x.astype(jnp.float32)
    assert x.shape[1] == _K and W.shape == (_M, _K) and b.shape == (_M,)
    w_flat, b_flat = _reg_and_flatten(W, b, weight_reg)
    out_t = _forward_channels_first(x.T, w_flat, b_flat,
                                    C1=C1, C2=C2, tile_n=tile_n)
    return out_t.T                        # (N, 4); padded columns already sliced


@partial(jax.jit, static_argnames=("C1", "C2", "weight_reg", "tile_n"))
def gt_2d_diamond_forward_channels_first(x_t, W, b, C1=1.0, C2=25.0,
                                         weight_reg=True, tile_n=131072):
    """Transpose-free contract: x_t (2, N) f32 -> (4, N) f32."""
    x_t = x_t.astype(jnp.float32)
    assert x_t.shape[0] == _K and W.shape == (_M, _K) and b.shape == (_M,)
    w_flat, b_flat = _reg_and_flatten(W, b, weight_reg)
    return _forward_channels_first(x_t, w_flat, b_flat,
                                   C1=C1, C2=C2, tile_n=tile_n)


def reference_forward(x, W, b, C1=1.0, C2=25.0, weight_reg=True):
    """Pure-JAX reference mirroring the PyTorch module exactly."""
    if weight_reg:
        W = W / jnp.max(jnp.abs(W), axis=1, keepdims=True)
    z = x @ W.T + b
    y_pos = 1.0 / (1.0 + (z / C2) ** 2)
    y_neg = 1.0 / (1.0 + (z / C1) ** 2)
    pos_mask = (z >= 0.0).astype(jnp.float32)
    return y_pos * pos_mask + y_neg * (1.0 - pos_mask)


if __name__ == "__main__":
    key = jax.random.PRNGKey(0)

    # Deterministic parameters exactly as in the module's __init__.
    W = jnp.array([[1.0, -1.0],
                   [-1.0, 1.0],
                   [1.0, 1.0],
                   [-1.0, -1.0]], dtype=jnp.float32)
    b = jnp.zeros((4,), dtype=jnp.float32)

    # Small input batch of 2-D points, shape (256, 2).
    x = jax.random.normal(key, (256, 2), dtype=jnp.float32) * 10.0

    out = gt_2d_diamond_forward(x, W, b, C1=1.0, C2=25.0, weight_reg=True)
    out = jax.block_until_ready(out)
    ref = reference_forward(x, W, b, C1=1.0, C2=25.0, weight_reg=True)
    assert out.shape == (256, 4)
    assert jnp.allclose(out, ref, atol=1e-5, rtol=1e-5), "mismatch vs reference"

    # Non-multiple-of-tile, multi-grid-step case (checks padding/tiling/slicing).
    x2 = jax.random.normal(jax.random.PRNGKey(1), (5000, 2), dtype=jnp.float32) * 5.0
    out2 = jax.block_until_ready(
        gt_2d_diamond_forward(x2, W, b, C1=1.0, C2=25.0, weight_reg=True,
                              tile_n=2048))
    ref2 = reference_forward(x2, W, b, C1=1.0, C2=25.0, weight_reg=True)
    assert out2.shape == (5000, 4)
    assert jnp.allclose(out2, ref2, atol=1e-5, rtol=1e-5), "mismatch (padded case)"

    # Transpose-free entry point (preferred contract for hot paths).
    out3 = jax.block_until_ready(
        gt_2d_diamond_forward_channels_first(x.T, W, b, C1=1.0, C2=25.0,
                                             weight_reg=True))
    assert out3.shape == (4, 256)
    assert jnp.allclose(out3.T, ref, atol=1e-5, rtol=1e-5), "mismatch (channels-first)"

    print("KERNEL_OK")
</pallas_src>

<mosaic_0001>
module attributes {stable_mosaic.version = 11 : i64} {
  func.func @kernel(%arg0: i32, %arg1: memref<8xf32, #tpu.memory_space<smem>>, %arg2: memref<4xf32, #tpu.memory_space<smem>>, %arg3: memref<2x8x128xf32, #tpu.memory_space<vmem>>, %arg4: memref<4x8x128xf32, #tpu.memory_space<vmem>>) attributes {dimension_semantics = [#tpu.dimension_semantics<parallel>], iteration_bounds = array<i64: 1>, scalar_prefetch = 0 : i64, scratch_operands = 0 : i64, tpu.core_type = #tpu.core_type<tc>, window_params = [{transform_indices = @transform_0, window_bounds = array<i64: 8>}, {transform_indices = @transform_1, window_bounds = array<i64: 4>}, {transform_indices = @transform_2, window_bounds = array<i64: 2, 8, 128>}, {transform_indices = @transform_3, window_bounds = array<i64: 4, 8, 128>}]} {
    %c0 = arith.constant 0 : index
    %c0_0 = arith.constant 0 : index
    %c0_1 = arith.constant 0 : index
    %0 = vector.load %arg3[%c0, %c0_0, %c0_1] : memref<2x8x128xf32, #tpu.memory_space<vmem>>, vector<1x8x128xf32>
    %1 = vector.shape_cast %0 : vector<1x8x128xf32> to vector<8x128xf32>
    %c1 = arith.constant 1 : index
    %c0_2 = arith.constant 0 : index
    %c0_3 = arith.constant 0 : index
    %2 = vector.load %arg3[%c1, %c0_2, %c0_3] : memref<2x8x128xf32, #tpu.memory_space<vmem>>, vector<1x8x128xf32>
    %3 = vector.shape_cast %2 : vector<1x8x128xf32> to vector<8x128xf32>
    %c0_4 = arith.constant 0 : index
    %4 = memref.load %arg1[%c0_4] : memref<8xf32, #tpu.memory_space<smem>>
    %5 = vector.broadcast %4 : f32 to vector<8x128xf32>
    %6 = arith.mulf %1, %5 : vector<8x128xf32>
    %c1_5 = arith.constant 1 : index
    %7 = memref.load %arg1[%c1_5] : memref<8xf32, #tpu.memory_space<smem>>
    %8 = vector.broadcast %7 : f32 to vector<8x128xf32>
    %9 = arith.mulf %3, %8 : vector<8x128xf32>
    %10 = arith.addf %6, %9 : vector<8x128xf32>
    %c0_6 = arith.constant 0 : index
    %11 = memref.load %arg2[%c0_6] : memref<4xf32, #tpu.memory_space<smem>>
    %12 = vector.broadcast %11 : f32 to vector<8x128xf32>
    %13 = arith.addf %10, %12 : vector<8x128xf32>
    %cst = arith.constant 0.000000e+00 : f32
    %14 = vector.broadcast %cst : f32 to vector<8x128xf32>
    %15 = arith.cmpf oge, %13, %14 : vector<8x128xf32>
    %cst_7 = arith.constant 1.600000e-03 : f32
    %cst_8 = arith.constant 1.000000e+00 : f32
    %16 = vector.broadcast %cst_7 : f32 to vector<8x128xf32>
    %17 = vector.broadcast %cst_8 : f32 to vector<8x128xf32>
    %18 = arith.select %15, %16, %17 : vector<8x128xi1>, vector<8x128xf32>
    %19 = arith.mulf %13, %13 : vector<8x128xf32>
    %20 = arith.mulf %19, %18 : vector<8x128xf32>
    %cst_9 = arith.constant 1.000000e+00 : f32
    %21 = vector.broadcast %cst_9 : f32 to vector<8x128xf32>
    %22 = arith.addf %21, %20 : vector<8x128xf32>
    %23 = tpu.reciprocal %22 {approx = true} : vector<8x128xf32> -> vector<8x128xf32>
    %24 = arith.mulf %22, %23 : vector<8x128xf32>
    %cst_10 = arith.constant 2.000000e+00 : f32
    %25 = vector.broadcast %cst_10 : f32 to vector<8x128xf32>
    %26 = arith.subf %25, %24 : vector<8x128xf32>
    %27 = arith.mulf %23, %26 : vector<8x128xf32>
    %c0_11 = arith.constant 0 : index
    %c0_12 = arith.constant 0 : index
    %c0_13 = arith.constant 0 : index
    %28 = vector.load %arg4[%c0_11, %c0_12, %c0_13] : memref<4x8x128xf32, #tpu.memory_space<vmem>>, vector<1x8x128xf32>
    %29 = vector.shape_cast %28 : vector<1x8x128xf32> to vector<8x128xf32>
    %30 = vector.shape_cast %27 : vector<8x128xf32> to vector<1x8x128xf32>
    tpu.vector_store %arg4[%c0_11, %c0_12, %c0_13], %30 {strides = array<i32>} : memref<4x8x128xf32, #tpu.memory_space<vmem>>, vector<1x8x128xf32>,
    %c2 = arith.constant 2 : index
    %31 = memref.load %arg1[%c2] : memref<8xf32, #tpu.memory_space<smem>>
    %32 = vector.broadcast %31 : f32 to vector<8x128xf32>
    %33 = arith.mulf %1, %32 : vector<8x128xf32>
    %c3 = arith.constant 3 : index
    %34 = memref.load %arg1[%c3] : memref<8xf32, #tpu.memory_space<smem>>
    %35 = vector.broadcast %34 : f32 to vector<8x128xf32>
    %36 = arith.mulf %3, %35 : vector<8x128xf32>
    %37 = arith.addf %33, %36 : vector<8x128xf32>
    %c1_14 = arith.constant 1 : index
    %38 = memref.load %arg2[%c1_14] : memref<4xf32, #tpu.memory_space<smem>>
    %39 = vector.broadcast %38 : f32 to vector<8x128xf32>
    %40 = arith.addf %37, %39 : vector<8x128xf32>
    %cst_15 = arith.constant 0.000000e+00 : f32
    %41 = vector.broadcast %cst_15 : f32 to vector<8x128xf32>
    %42 = arith.cmpf oge, %40, %41 : vector<8x128xf32>
    %cst_16 = arith.constant 1.600000e-03 : f32
    %cst_17 = arith.constant 1.000000e+00 : f32
    %43 = vector.broadcast %cst_16 : f32 to vector<8x128xf32>
    %44 = vector.broadcast %cst_17 : f32 to vector<8x128xf32>
    %45 = arith.select %42, %43, %44 : vector<8x128xi1>, vector<8x128xf32>
    %46 = arith.mulf %40, %40 : vector<8x128xf32>
    %47 = arith.mulf %46, %45 : vector<8x128xf32>
    %cst_18 = arith.constant 1.000000e+00 : f32
    %48 = vector.broadcast %cst_18 : f32 to vector<8x128xf32>
    %49 = arith.addf %48, %47 : vector<8x128xf32>
    %50 = tpu.reciprocal %49 {approx = true} : vector<8x128xf32> -> vector<8x128xf32>
    %51 = arith.mulf %49, %50 : vector<8x128xf32>
    %cst_19 = arith.constant 2.000000e+00 : f32
    %52 = vector.broadcast %cst_19 : f32 to vector<8x128xf32>
    %53 = arith.subf %52, %51 : vector<8x128xf32>
    %54 = arith.mulf %50, %53 : vector<8x128xf32>
    %c1_20 = arith.constant 1 : index
    %c0_21 = arith.constant 0 : index
    %c0_22 = arith.constant 0 : index
    %55 = vector.load %arg4[%c1_20, %c0_21, %c0_22] : memref<4x8x128xf32, #tpu.memory_space<vmem>>, vector<1x8x128xf32>
    %56 = vector.shape_cast %55 : vector<1x8x128xf32> to vector<8x128xf32>
    %57 = vector.shape_cast %54 : vector<8x128xf32> to vector<1x8x128xf32>
    tpu.vector_store %arg4[%c1_20, %c0_21, %c0_22], %57 {strides = array<i32>} : memref<4x8x128xf32, #tpu.memory_space<vmem>>, vector<1x8x128xf32>,
    %c4 = arith.constant 4 : index
    %58 = memref.load %arg1[%c4] : memref<8xf32, #tpu.memory_space<smem>>
    %59 = vector.broadcast %58 : f32 to vector<8x128xf32>
    %60 = arith.mulf %1, %59 : vector<8x128xf32>
    %c5 = arith.constant 5 : index
    %61 = memref.load %arg1[%c5] : memref<8xf32, #tpu.memory_space<smem>>
    %62 = vector.broadcast %61 : f32 to vector<8x128xf32>
    %63 = arith.mulf %3, %62 : vector<8x128xf32>
    %64 = arith.addf %60, %63 : vector<8x128xf32>
    %c2_23 = arith.constant 2 : index
    %65 = memref.load %arg2[%c2_23] : memref<4xf32, #tpu.memory_space<smem>>
    %66 = vector.broadcast %65 : f32 to vector<8x128xf32>
    %67 = arith.addf %64, %66 : vector<8x128xf32>
    %cst_24 = arith.constant 0.000000e+00 : f32
    %68 = vector.broadcast %cst_24 : f32 to vector<8x128xf32>
    %69 = arith.cmpf oge, %67, %68 : vector<8x128xf32>
    %cst_25 = arith.constant 1.600000e-03 : f32
    %cst_26 = arith.constant 1.000000e+00 : f32
    %70 = vector.broadcast %cst_25 : f32 to vector<8x128xf32>
    %71 = vector.broadcast %cst_26 : f32 to vector<8x128xf32>
    %72 = arith.select %69, %70, %71 : vector<8x128xi1>, vector<8x128xf32>
    %73 = arith.mulf %67, %67 : vector<8x128xf32>
    %74 = arith.mulf %73, %72 : vector<8x128xf32>
    %cst_27 = arith.constant 1.000000e+00 : f32
    %75 = vector.broadcast %cst_27 : f32 to vector<8x128xf32>
    %76 = arith.addf %75, %74 : vector<8x128xf32>
    %77 = tpu.reciprocal %76 {approx = true} : vector<8x128xf32> -> vector<8x128xf32>
    %78 = arith.mulf %76, %77 : vector<8x128xf32>
    %cst_28 = arith.constant 2.000000e+00 : f32
    %79 = vector.broadcast %cst_28 : f32 to vector<8x128xf32>
    %80 = arith.subf %79, %78 : vector<8x128xf32>
    %81 = arith.mulf %77, %80 : vector<8x128xf32>
    %c2_29 = arith.constant 2 : index
    %c0_30 = arith.constant 0 : index
    %c0_31 = arith.constant 0 : index
    %82 = vector.load %arg4[%c2_29, %c0_30, %c0_31] : memref<4x8x128xf32, #tpu.memory_space<vmem>>, vector<1x8x128xf32>
    %83 = vector.shape_cast %82 : vector<1x8x128xf32> to vector<8x128xf32>
    %84 = vector.shape_cast %81 : vector<8x128xf32> to vector<1x8x128xf32>
    tpu.vector_store %arg4[%c2_29, %c0_30, %c0_31], %84 {strides = array<i32>} : memref<4x8x128xf32, #tpu.memory_space<vmem>>, vector<1x8x128xf32>,
    %c6 = arith.constant 6 : index
    %85 = memref.load %arg1[%c6] : memref<8xf32, #tpu.memory_space<smem>>
    %86 = vector.broadcast %85 : f32 to vector<8x128xf32>
    %87 = arith.mulf %1, %86 : vector<8x128xf32>
    %c7 = arith.constant 7 : index
    %88 = memref.load %arg1[%c7] : memref<8xf32, #tpu.memory_space<smem>>
    %89 = vector.broadcast %88 : f32 to vector<8x128xf32>
    %90 = arith.mulf %3, %89 : vector<8x128xf32>
    %91 = arith.addf %87, %90 : vector<8x128xf32>
    %c3_32 = arith.constant 3 : index
    %92 = memref.load %arg2[%c3_32] : memref<4xf32, #tpu.memory_space<smem>>
    %93 = vector.broadcast %92 : f32 to vector<8x128xf32>
    %94 = arith.addf %91, %93 : vector<8x128xf32>
    %cst_33 = arith.constant 0.000000e+00 : f32
    %95 = vector.broadcast %cst_33 : f32 to vector<8x128xf32>
    %96 = arith.cmpf oge, %94, %95 : vector<8x128xf32>
    %cst_34 = arith.constant 1.600000e-03 : f32
    %cst_35 = arith.constant 1.000000e+00 : f32
    %97 = vector.broadcast %cst_34 : f32 to vector<8x128xf32>
    %98 = vector.broadcast %cst_35 : f32 to vector<8x128xf32>
    %99 = arith.select %96, %97, %98 : vector<8x128xi1>, vector<8x128xf32>
    %100 = arith.mulf %94, %94 : vector<8x128xf32>
    %101 = arith.mulf %100, %99 : vector<8x128xf32>
    %cst_36 = arith.constant 1.000000e+00 : f32
    %102 = vector.broadcast %cst_36 : f32 to vector<8x128xf32>
    %103 = arith.addf %102, %101 : vector<8x128xf32>
    %104 = tpu.reciprocal %103 {approx = true} : vector<8x128xf32> -> vector<8x128xf32>
    %105 = arith.mulf %103, %104 : vector<8x128xf32>
    %cst_37 = arith.constant 2.000000e+00 : f32
    %106 = vector.broadcast %cst_37 : f32 to vector<8x128xf32>
    %107 = arith.subf %106, %105 : vector<8x128xf32>
    %108 = arith.mulf %104, %107 : vector<8x128xf32>
    %c3_38 = arith.constant 3 : index
    %c0_39 = arith.constant 0 : index
    %c0_40 = arith.constant 0 : index
    %109 = vector.load %arg4[%c3_38, %c0_39, %c0_40] : memref<4x8x128xf32, #tpu.memory_space<vmem>>, vector<1x8x128xf32>
    %110 = vector.shape_cast %109 : vector<1x8x128xf32> to vector<8x128xf32>
    %111 = vector.shape_cast %108 : vector<8x128xf32> to vector<1x8x128xf32>
    tpu.vector_store %arg4[%c3_38, %c0_39, %c0_40], %111 {strides = array<i32>} : memref<4x8x128xf32, #tpu.memory_space<vmem>>, vector<1x8x128xf32>,
    return
  }
  func.func @transform_0(%arg0: i32) -> i32 {
    %c0_i32 = arith.constant 0 : i32
    %c0_i32_0 = arith.constant 0 : i32
    return %c0_i32 : i32
  }
  func.func @transform_1(%arg0: i32) -> i32 {
    %c0_i32 = arith.constant 0 : i32
    %c0_i32_0 = arith.constant 0 : i32
    return %c0_i32 : i32
  }
  func.func @transform_2(%arg0: i32) -> (i32, i32, i32) {
    %c0_i32 = arith.constant 0 : i32
    %c0_i32_0 = arith.constant 0 : i32
    %c0_i32_1 = arith.constant 0 : i32
    return %c0_i32, %arg0, %c0_i32_0 : i32, i32, i32
  }
  func.func @transform_3(%arg0: i32) -> (i32, i32, i32) {
    %c0_i32 = arith.constant 0 : i32
    %c0_i32_0 = arith.constant 0 : i32
    %c0_i32_1 = arith.constant 0 : i32
    return %c0_i32, %arg0, %c0_i32_0 : i32, i32, i32
  }
}

</mosaic_0001>

<llo_original>
// kernel: gt_2d_diamond_forward.1
$region0: #{gt_2d_diamond_forward.1}
  #allocation0 [shape = 'u32[]', space=smem, size = 0x4, offset = 0x4, fixed_abs, tag = 'smem constant byte address 0x4 - core index']
  #allocation1 [shape = 'u32[72,128]{1,0:T(1,128)}', space=vmem, size = 0x9000, scoped, tag = 'internal scratch']
  %s0 = inlined_call_operand.vmem [shape: f32[8], index: 0, kind: input, shape index: {}]
  %s1 = inlined_call_operand.vmem [shape: f32[4], index: 1, kind: input, shape index: {}]
  %s2 = inlined_call_operand.vmem [shape: f32[2,8,128], index: 2, kind: input, shape index: {}]
  %s3 = inlined_call_operand.vmem [shape: f32[4,8,128], index: 3, kind: output, shape index: {}]
  %s4 = sld [smem:[#allocation0]]
  $region30: #{gt_2d_diamond_forward.1} parent=0
    _
  %s6 = ssub.s32 1, %s4
  %s7 = scalar_select 0, %s6, %s4
  $region1: #{gt_2d_diamond_forward.1} parent=0
    #allocation2 [shape = 'u8[512]{0}', space=smem, size = 0x200, scoped, tag = 'input window, operand 0, single buffered']
    #allocation3 [shape = 's32[1]{0}', space=sflag, size = 0x4, scoped, tag = 'scoped memory for gt_2d_diamond_forward.1']
    #allocation4 [shape = 'u8[512]{0}', space=smem, size = 0x200, scoped, tag = 'input window, operand 1, single buffered']
    #allocation5 [shape = 's32[1]{0}', space=sflag, size = 0x4, scoped, tag = 'scoped memory for gt_2d_diamond_forward.1']
    %8 = vsyncpa [#allocation3], 0
    %9 = vsyncpa [#allocation5], 0
    // Predicated region
    $region2: #{gt_2d_diamond_forward.1} parent=1 // pred_check
      _
    $region3: #{gt_2d_diamond_forward.1} parent=1 // pred_check_branch
      %11 = sbr.rel (0) target = $region5
    $region4: #{gt_2d_diamond_forward.1} parent=1 // pred_region
      %13 = vsyncadd [#allocation3], 0
      %s15 = sshll.u32 %s0, 4
      %s16 = int_to_ptr.vmem [resolvable:$true] %s15
      %18 = dma.vmem_to_smem %s16, 16, [#allocation2], [#allocation3]
    $region5: #{gt_2d_diamond_forward.1} parent=1 // pred_fallthru
      _
    // Predicated region
    $region6: #{gt_2d_diamond_forward.1} parent=1 // pred_check
      _
    $region7: #{gt_2d_diamond_forward.1} parent=1 // pred_check_branch
      %20 = sbr.rel (0) target = $region9
    $region8: #{gt_2d_diamond_forward.1} parent=1 // pred_region
      %22 = vsyncadd [#allocation5], 0
      %s24 = sshll.u32 %s1, 4
      %s25 = int_to_ptr.vmem [resolvable:$true] %s24
      %27 = dma.vmem_to_smem %s25, 16, [#allocation4], [#allocation5]
    $region9: #{gt_2d_diamond_forward.1} parent=1 // pred_fallthru
      _
    // Predicated region
    $region10: #{gt_2d_diamond_forward.1} parent=1 // pred_check
      _
    $region11: #{gt_2d_diamond_forward.1} parent=1 // pred_check_branch
      %29 = sbr.rel (0) target = $region13
    $region12: #{gt_2d_diamond_forward.1} parent=1 // pred_region
      _
    $region13: #{gt_2d_diamond_forward.1} parent=1 // pred_fallthru
      _
    // Predicated region
    $region14: #{gt_2d_diamond_forward.1} parent=1 // pred_check
      _
    $region15: #{gt_2d_diamond_forward.1} parent=1 // pred_check_branch
      %31 = sbr.rel (0) target = $region17
    $region16: #{gt_2d_diamond_forward.1} parent=1 // pred_region
      %33 = dma.done [#allocation3], 16
    $region17: #{gt_2d_diamond_forward.1} parent=1 // pred_fallthru
      _
    // Predicated region
    $region18: #{gt_2d_diamond_forward.1} parent=1 // pred_check
      _
    $region19: #{gt_2d_diamond_forward.1} parent=1 // pred_check_branch
      %35 = sbr.rel (0) target = $region21
    $region20: #{gt_2d_diamond_forward.1} parent=1 // pred_region
      %37 = dma.done [#allocation5], 16
    $region21: #{gt_2d_diamond_forward.1} parent=1 // pred_fallthru
      _
    %38 = sfence
    %v39 = vld [vmem:[%s2] sm:$0xff]
    %s40 = scalar_lea.vmem %s2, 8
    %v41 = vld [vmem:[%s40] sm:$0xff]
    %s42 = sld [smem:[#allocation2]]
    %v43 = vstv %s42
    %v44 = vmul.f32 %v39, %v43
    %s45 = sld [smem:[#allocation2 + $0x1]]
    %v46 = vstv %s45
    %v47 = vmul.f32 %v41, %v46
    %v48 = vadd.f32 %v44, %v47
    %s49 = sld [smem:[#allocation4]]
    %v50 = vstv %s49
    %v51 = vadd.f32 %v48, %v50
    %vm52 = vcmp.ge.f32.partialorder %v51, 0.0
    %v53 = vsel %vm52, 0.0016, 1.0
    %v54 = vmul.f32 %v51, %v51
    %v55 = vmul.f32 %v54, %v53
    %v56 = vadd.f32 %v55, 1.0
    %v57 = vrcp.pop %v56
    %v58 = vmul.f32 %v56, %v57
    %v59 = vsub.f32 2.0, %v58
    %v60 = vmul.f32 %v57, %v59
    %61 = vst [vmem:[%s3] sm:$0xff] %v60
    %s62 = sld [smem:[#allocation2 + $0x2]]
    %v63 = vstv %s62
    %v64 = vmul.f32 %v39, %v63
    %s65 = sld [smem:[#allocation2 + $0x3]]
    %v66 = vstv %s65
    %v67 = vmul.f32 %v41, %v66
    %v68 = vadd.f32 %v64, %v67
    %s69 = sld [smem:[#allocation4 + $0x1]]
    %v70 = vstv %s69
    %v71 = vadd.f32 %v68, %v70
    %vm72 = vcmp.ge.f32.partialorder %v71, 0.0
    %v73 = vsel %vm72, 0.0016, 1.0
    %v74 = vmul.f32 %v71, %v71
    %v75 = vmul.f32 %v74, %v73
    %v76 = vadd.f32 %v75, 1.0
    %v77 = vrcp.pop %v76
    %v78 = vmul.f32 %v76, %v77
    %v79 = vsub.f32 2.0, %v78
    %v80 = vmul.f32 %v77, %v79
    %s81 = scalar_lea.vmem %s3, 8
    %82 = vst [vmem:[%s81] sm:$0xff] %v80
    %s83 = sld [smem:[#allocation2 + $0x4]]
    %v84 = vstv %s83
    %v85 = vmul.f32 %v39, %v84
    %s86 = sld [smem:[#allocation2 + $0x5]]
    %v87 = vstv %s86
    %v88 = vmul.f32 %v41, %v87
    %v89 = vadd.f32 %v85, %v88
    %s90 = sld [smem:[#allocation4 + $0x2]]
    %v91 = vstv %s90
    %v92 = vadd.f32 %v89, %v91
    %vm93 = vcmp.ge.f32.partialorder %v92, 0.0
    %v94 = vsel %vm93, 0.0016, 1.0
    %v95 = vmul.f32 %v92, %v92
    %v96 = vmul.f32 %v95, %v94
    %v97 = vadd.f32 %v96, 1.0
    %v98 = vrcp.pop %v97
    %v99 = vmul.f32 %v97, %v98
    %v100 = vsub.f32 2.0, %v99
    %v101 = vmul.f32 %v98, %v100
    %s102 = scalar_lea.vmem %s3, 16
    %103 = vst [vmem:[%s102] sm:$0xff] %v101
    %s104 = sld [smem:[#allocation2 + $0x6]]
    %v105 = vstv %s104
    %v106 = vmul.f32 %v39, %v105
    %s107 = sld [smem:[#allocation2 + $0x7]]
    %v108 = vstv %s107
    %v109 = vmul.f32 %v41, %v108
    %v110 = vadd.f32 %v106, %v109
    %s111 = sld [smem:[#allocation4 + $0x3]]
    %v112 = vstv %s111
    %v113 = vadd.f32 %v110, %v112
    %vm114 = vcmp.ge.f32.partialorder %v113, 0.0
    %v115 = vsel %vm114, 0.0016, 1.0
    %v116 = vmul.f32 %v113, %v113
    %v117 = vmul.f32 %v116, %v115
    %v118 = vadd.f32 %v117, 1.0
    %v119 = vrcp.pop %v118
    %v120 = vmul.f32 %v118, %v119
    %v121 = vsub.f32 2.0, %v120
    %v122 = vmul.f32 %v119, %v121
    %s123 = scalar_lea.vmem %s3, 24
    %124 = vst [vmem:[%s123] sm:$0xff] %v122
    // Predicated region
    $region22: #{gt_2d_diamond_forward.1} parent=1 // pred_check
      _
    $region23: #{gt_2d_diamond_forward.1} parent=1 // pred_check_branch
      %126 = sbr.rel (0) target = $region25
    $region24: #{gt_2d_diamond_forward.1} parent=1 // pred_region
      _
    $region25: #{gt_2d_diamond_forward.1} parent=1 // pred_fallthru
      _
    // Predicated region
    $region26: #{gt_2d_diamond_forward.1} parent=1 // pred_check
      _
    $region27: #{gt_2d_diamond_forward.1} parent=1 // pred_check_branch
      %128 = sbr.rel (0) target = $region29
    $region28: #{gt_2d_diamond_forward.1} parent=1 // pred_region
      _
    $region29: #{gt_2d_diamond_forward.1} parent=1 // pred_fallthru
      _
    %129 = vsyncpa [#allocation3], 1
    %130 = vsyncpa [#allocation5], 1

</llo_original>
